<compile_context>
chip_gen: v6e
topology: v6e:2x2x1
jax: 0.10.0
libtpu: 0.0.40
codegen_flags: <defaults>
</compile_context>

<pallas_src>
import functools

import jax
import jax.numpy as jnp
from jax.experimental import pallas as pl
from jax.experimental.pallas import tpu as pltpu


_VMEM_LIMIT_BYTES = 32 * 1024 * 1024   # safe on v5e/v6e/v7x scoped VMEM
_TILE_TARGET_BYTES = 2 * 1024 * 1024   # ~2 MiB per x tile (≈85%+ HBM roofline)


# ----------------------------- kernels ------------------------------------ #

def _pool_kernel(x_ref, avg_ref, max_ref, *, inv_n):
    # x_ref: (tr, N) tile of the (B*C, H*W) slab.
    x = x_ref[...].astype(jnp.float32)
    avg_ref[...] = jnp.sum(x, axis=1, keepdims=True) * inv_n
    max_ref[...] = jnp.max(x, axis=1, keepdims=True)


def _mlp_kernel(avg_ref, max_ref, w1_ref, w2_ref, attn_ref):
    # avg/max: (B, C); w1: (C, C//r); w2: (C//r, C).  Everything is tiny and
    # lives fully in VMEM (single grid step).
    w1 = w1_ref[...]
    w2 = w2_ref[...]

    def mlp(v):
        h = jnp.maximum(
            jnp.dot(v, w1, precision=jax.lax.Precision.HIGHEST,
                    preferred_element_type=jnp.float32), 0.0)
        return jnp.dot(h, w2, precision=jax.lax.Precision.HIGHEST,
                       preferred_element_type=jnp.float32)

    logits = mlp(avg_ref[...]) + mlp(max_ref[...])
    attn_ref[...] = 1.0 / (1.0 + jnp.exp(-logits))   # sigmoid (EUP exp)


def _scale_kernel(x_ref, s_ref, o_ref):
    # x_ref: (tr, N); s_ref: (tr, 1) per-row gate -> broadcast multiply.
    o_ref[...] = (x_ref[...].astype(jnp.float32) * s_ref[...]).astype(o_ref.dtype)


# ----------------------------- wrapper ------------------------------------ #

def _row_tile(rows, cols, itemsize, target_bytes=_TILE_TARGET_BYTES):
    """Sublane-aligned row tile of ~target_bytes for a (rows, cols) slab."""
    sub = 8 * max(1, 4 // itemsize)          # 8 for f32, 16 for bf16, 32 for i8
    if rows <= sub:
        return rows                          # full-dim block (always legal)
    tr = target_bytes // max(1, cols * itemsize)
    tr = max(sub, (tr // sub) * sub)
    return rows if tr >= rows else tr


def channel_attention_hsfpn(x, w1, w2, flag=True):
    """x: (B, C, H, W); w1: (C//r, C) conv1 weight; w2: (C, C//r) conv2 weight."""
    B, C, H, W = x.shape
    R, N = B * C, H * W
    x2 = x.reshape(R, N)                     # free, contiguous view

    itemsize = jnp.dtype(x.dtype).itemsize
    tr = _row_tile(R, N, itemsize)
    nr = pl.cdiv(R, tr)
    cparams = pltpu.CompilerParams(
        dimension_semantics=("parallel",),
        vmem_limit_bytes=_VMEM_LIMIT_BYTES,
    )

    # 1) fused global average + max pooling over the spatial axis.
    avg, mx = pl.pallas_call(
        functools.partial(_pool_kernel, inv_n=1.0 / N),
        out_shape=(jax.ShapeDtypeStruct((R, 1), jnp.float32),
                   jax.ShapeDtypeStruct((R, 1), jnp.float32)),
        grid=(nr,),
        in_specs=[pl.BlockSpec((tr, N), lambda i: (i, 0))],
        out_specs=(pl.BlockSpec((tr, 1), lambda i: (i, 0)),
                   pl.BlockSpec((tr, 1), lambda i: (i, 0))),
        compiler_params=cparams,
    )(x2)

    # 2) shared MLP (the two 1x1 convs) + sigmoid on the pooled vectors.
    attn = pl.pallas_call(
        _mlp_kernel,
        out_shape=jax.ShapeDtypeStruct((B, C), jnp.float32),
    )(avg.reshape(B, C), mx.reshape(B, C),
      jnp.transpose(w1).astype(jnp.float32),
      jnp.transpose(w2).astype(jnp.float32))

    if not flag:
        return attn.reshape(B, C, 1, 1).astype(x.dtype)

    # 3) broadcast the per-(B, C) gate over H*W (read + write of x, tiled).
    y2 = pl.pallas_call(
        _scale_kernel,
        out_shape=jax.ShapeDtypeStruct((R, N), x.dtype),
        grid=(nr,),
        in_specs=[pl.BlockSpec((tr, N), lambda i: (i, 0)),
                  pl.BlockSpec((tr, 1), lambda i: (i, 0))],
        out_specs=pl.BlockSpec((tr, N), lambda i: (i, 0)),
        compiler_params=cparams,
    )(x2, attn.reshape(R, 1))
    return y2.reshape(B, C, H, W)


def _xavier_uniform(key, shape, dtype=jnp.float32):
    fan_out, fan_in = shape                  # matches (out_ch, in_ch, 1, 1)
    bound = (6.0 / (fan_in + fan_out)) ** 0.5
    return jax.random.uniform(key, shape, dtype=dtype, minval=-bound, maxval=bound)


class ChannelAttentionHSFPN:
    """JAX/Pallas port of ultralytics ChannelAttention_HSFPN."""

    def __init__(self, in_planes, ratio=4, flag=True, *, key=None):
        if key is None:
            key = jax.random.PRNGKey(0)
        k1, k2 = jax.random.split(key)
        hidden = in_planes // ratio
        self.flag = flag
        self.w1 = _xavier_uniform(k1, (hidden, in_planes))   # conv1: (C/r, C, 1, 1)
        self.w2 = _xavier_uniform(k2, (in_planes, hidden))   # conv2: (C, C/r, 1, 1)

    def __call__(self, x):
        return channel_attention_hsfpn(x, self.w1, self.w2, flag=self.flag)


# --------------------------- reference & test ------------------------------ #

def _reference(x, w1, w2, flag=True):
    avg = jnp.mean(x, axis=(2, 3))
    mx = jnp.max(x, axis=(2, 3))

    def mlp(v):
        h = jnp.maximum(jnp.dot(v, w1.T, precision=jax.lax.Precision.HIGHEST), 0.0)
        return jnp.dot(h, w2.T, precision=jax.lax.Precision.HIGHEST)

    attn = jax.nn.sigmoid(mlp(avg) + mlp(mx))
    if flag:
        return attn[:, :, None, None] * x
    return attn[:, :, None, None].astype(x.dtype)


if __name__ == "__main__":
    key = jax.random.PRNGKey(0)
    kx, kw = jax.random.split(key)

    B, C, H, W = 2, 16, 16, 16                      # small NCHW test case
    x = jax.random.normal(kx, (B, C, H, W), dtype=jnp.float32)

    mod = ChannelAttentionHSFPN(in_planes=C, ratio=4, flag=True, key=kw)
    out = jax.block_until_ready(mod(x))

    ref = _reference(x, mod.w1, mod.w2, flag=True)
    assert out.shape == ref.shape and out.dtype == ref.dtype
    assert jnp.allclose(out, ref, atol=1e-4, rtol=1e-4), \
        float(jnp.max(jnp.abs(out - ref)))
    print("KERNEL_OK")
</pallas_src>

<mosaic_0001>
module attributes {stable_mosaic.version = 11 : i64} {
  func.func @_pool_kernel(%arg0: i32, %arg1: memref<32x256xf32, #tpu.memory_space<vmem>>, %arg2: memref<32x1xf32, #tpu.memory_space<vmem>>, %arg3: memref<32x1xf32, #tpu.memory_space<vmem>>) attributes {dimension_semantics = [#tpu.dimension_semantics<parallel>], iteration_bounds = array<i64: 1>, scalar_prefetch = 0 : i64, scratch_operands = 0 : i64, tpu.core_type = #tpu.core_type<tc>, window_params = [{transform_indices = @transform_0, window_bounds = array<i64: 32, 256>}, {transform_indices = @transform_1, window_bounds = array<i64: 32, 1>}, {transform_indices = @transform_2, window_bounds = array<i64: 32, 1>}]} {
    %c0 = arith.constant 0 : index
    %c0_0 = arith.constant 0 : index
    %0 = vector.load %arg1[%c0, %c0_0] : memref<32x256xf32, #tpu.memory_space<vmem>>, vector<32x256xf32>
    %cst = arith.constant dense<0.000000e+00> : vector<32xf32>
    %1 = vector.multi_reduction <add>, %0, %cst [1] : vector<32x256xf32> to vector<32xf32>
    %2 = vector.shape_cast %1 : vector<32xf32> to vector<32x1xf32>
    %cst_1 = arith.constant 3.906250e-03 : f32
    %3 = vector.broadcast %cst_1 : f32 to vector<32x1xf32>
    %4 = arith.mulf %2, %3 : vector<32x1xf32>
    %c0_2 = arith.constant 0 : index
    %c0_3 = arith.constant 0 : index
    %5 = vector.load %arg2[%c0_2, %c0_3] : memref<32x1xf32, #tpu.memory_space<vmem>>, vector<32x1xf32>
    tpu.vector_store %arg2[%c0_2, %c0_3], %4 {strides = array<i32>} : memref<32x1xf32, #tpu.memory_space<vmem>>, vector<32x1xf32>,
    %cst_4 = arith.constant dense<0xFF800000> : vector<32xf32>
    %6 = vector.multi_reduction <maximumf>, %0, %cst_4 [1] : vector<32x256xf32> to vector<32xf32>
    %7 = vector.shape_cast %6 : vector<32xf32> to vector<32x1xf32>
    %c0_5 = arith.constant 0 : index
    %c0_6 = arith.constant 0 : index
    %8 = vector.load %arg3[%c0_5, %c0_6] : memref<32x1xf32, #tpu.memory_space<vmem>>, vector<32x1xf32>
    tpu.vector_store %arg3[%c0_5, %c0_6], %7 {strides = array<i32>} : memref<32x1xf32, #tpu.memory_space<vmem>>, vector<32x1xf32>,
    return
  }
  func.func @transform_0(%arg0: i32) -> (i32, i32) {
    %c0_i32 = arith.constant 0 : i32
    %c0_i32_0 = arith.constant 0 : i32
    return %arg0, %c0_i32 : i32, i32
  }
  func.func @transform_1(%arg0: i32) -> (i32, i32) {
    %c0_i32 = arith.constant 0 : i32
    %c0_i32_0 = arith.constant 0 : i32
    return %arg0, %c0_i32 : i32, i32
  }
  func.func @transform_2(%arg0: i32) -> (i32, i32) {
    %c0_i32 = arith.constant 0 : i32
    %c0_i32_0 = arith.constant 0 : i32
    return %arg0, %c0_i32 : i32, i32
  }
}

</mosaic_0001>

<llo_original>
// kernel: tpu_custom_call.1
$region0: #{tpu_custom_call.1}
  #allocation0 [shape = 'u32[]', space=smem, size = 0x4, offset = 0x4, fixed_abs, tag = 'smem constant byte address 0x4 - core index']
  #allocation1 [shape = 'u32[144,128]{1,0:T(1,128)}', space=vmem, size = 0x12000, scoped, tag = 'internal scratch']
  %s0 = inlined_call_operand.hbm [shape: f32[32,256], index: 0, kind: input, shape index: {}]
  %s1 = inlined_call_operand.vmem [shape: f32[32,1], index: 1, kind: output, shape index: {0}]
  %s2 = inlined_call_operand.vmem [shape: f32[32,1], index: 2, kind: output, shape index: {1}]
  %3 = xla_tuple %s1, %s2
  %s4 = sld [smem:[#allocation0]]
  $region26: #{tpu_custom_call.1} parent=0
    _
  %s6 = ssub.s32 1, %s4
  %s7 = scalar_select 0, %s6, %s4
  $region1: #{tpu_custom_call.1} parent=0
    #allocation2 [shape = 'u8[32768]{0}', space=vmem, size = 0x8000, scoped, tag = 'input window, operand 0, single buffered']
    #allocation3 [shape = 's32[1]{0}', space=sflag, size = 0x4, scoped, tag = 'scoped memory for tpu_custom_call.1']
    %8 = vsyncpa [#allocation3], 0
    // Predicated region
    $region2: #{tpu_custom_call.1} parent=1 // pred_check
      _
    $region3: #{tpu_custom_call.1} parent=1 // pred_check_branch
      %10 = sbr.rel (0) target = $region5
    $region4: #{tpu_custom_call.1} parent=1 // pred_region
      %s12 = ssub.s32 1024, 1024
      %13 = vsyncadd [#allocation3], %s12
      %s14 = sshll.u32 [#allocation2], 4
      %s15 = int_to_ptr.vmem [resolvable:$true] %s14
      %20 = dma.hbm_to_vmem [thread:$0]  %s0, 1024, %s15, [#allocation3], 256, 256, 16
    $region5: #{tpu_custom_call.1} parent=1 // pred_fallthru
      _
    // Predicated region
    $region6: #{tpu_custom_call.1} parent=1 // pred_check
      _
    $region7: #{tpu_custom_call.1} parent=1 // pred_check_branch
      %22 = sbr.rel (0) target = $region9
    $region8: #{tpu_custom_call.1} parent=1 // pred_region
      %23 = dma.done [#allocation3], 1024
    $region9: #{tpu_custom_call.1} parent=1 // pred_fallthru
      _
    %v24 = vld [vmem:[#allocation2] sm:$0xff]
    %v25 = vld [vmem:[#allocation2 + $0x8] sm:$0xff]
    %v26 = vld [vmem:[#allocation2 + $0x10] sm:$0xff]
    %v27 = vld [vmem:[#allocation2 + $0x18] sm:$0xff]
    %v28 = vld [vmem:[#allocation2 + $0x20] sm:$0xff]
    %v29 = vld [vmem:[#allocation2 + $0x28] sm:$0xff]
    %v30 = vld [vmem:[#allocation2 + $0x30] sm:$0xff]
    %v31 = vld [vmem:[#allocation2 + $0x38] sm:$0xff]
    %v32 = vadd.f32 %v24, %v25
    %33 = vadd.xlane.f32.xlu0 %v32
    %v34 = vpop.xlane.xlu0 %33
    %v35 = vadd.f32 %v26, %v27
    %36 = vadd.xlane.f32.xlu0 %v35
    %v37 = vpop.xlane.xlu0 %36
    %v38 = vadd.f32 %v28, %v29
    %39 = vadd.xlane.f32.xlu0 %v38
    %v40 = vpop.xlane.xlu0 %39
    %v41 = vadd.f32 %v30, %v31
    %42 = vadd.xlane.f32.xlu0 %v41
    %v43 = vpop.xlane.xlu0 %42
    %v44 = vmul.f32 %v34, 0.00390625
    %v45 = vmul.f32 %v37, 0.00390625
    %v46 = vmul.f32 %v40, 0.00390625
    %v47 = vmul.f32 %v43, 0.00390625
    %vm48 = vcmask 7168
    %49 = vst.msk [vmem:[%s1] sm:$0xff] %vm48, %v44
    %50 = vst.msk [vmem:[%s1 + $0x8] sm:$0xff] %vm48, %v45
    %51 = vst.msk [vmem:[%s1 + $0x10] sm:$0xff] %vm48, %v46
    %52 = vst.msk [vmem:[%s1 + $0x18] sm:$0xff] %vm48, %v47
    %v53 = vmax.f32 %v24, %v25
    %54 = vmax.xlane.f32.xlu0 %v53
    %v55 = vpop.xlane.xlu0 %54
    %v56 = vmax.f32 %v26, %v27
    %57 = vmax.xlane.f32.xlu0 %v56
    %v58 = vpop.xlane.xlu0 %57
    %v59 = vmax.f32 %v28, %v29
    %60 = vmax.xlane.f32.xlu0 %v59
    %v61 = vpop.xlane.xlu0 %60
    %v62 = vmax.f32 %v30, %v31
    %63 = vmax.xlane.f32.xlu0 %v62
    %v64 = vpop.xlane.xlu0 %63
    %65 = vst.msk [vmem:[%s2] sm:$0xff] %vm48, %v55
    %66 = vst.msk [vmem:[%s2 + $0x8] sm:$0xff] %vm48, %v58
    %67 = vst.msk [vmem:[%s2 + $0x10] sm:$0xff] %vm48, %v61
    %68 = vst.msk [vmem:[%s2 + $0x18] sm:$0xff] %vm48, %v64
    // Predicated region
    $region10: #{tpu_custom_call.1} parent=1 // pred_check
      _
    $region11: #{tpu_custom_call.1} parent=1 // pred_check_branch
      %70 = sbr.rel (0) target = $region13
    $region12: #{tpu_custom_call.1} parent=1 // pred_region
      _
    $region13: #{tpu_custom_call.1} parent=1 // pred_fallthru
      _
    // Predicated region
    $region14: #{tpu_custom_call.1} parent=1 // pred_check
      _
    $region15: #{tpu_custom_call.1} parent=1 // pred_check_branch
      %72 = sbr.rel (0) target = $region17
    $region16: #{tpu_custom_call.1} parent=1 // pred_region
      _
    $region17: #{tpu_custom_call.1} parent=1 // pred_fallthru
      _
    // Predicated region
    $region18: #{tpu_custom_call.1} parent=1 // pred_check
      _
    $region19: #{tpu_custom_call.1} parent=1 // pred_check_branch
      %74 = sbr.rel (0) target = $region21
    $region20: #{tpu_custom_call.1} parent=1 // pred_region
      _
    $region21: #{tpu_custom_call.1} parent=1 // pred_fallthru
      _
    // Predicated region
    $region22: #{tpu_custom_call.1} parent=1 // pred_check
      _
    $region23: #{tpu_custom_call.1} parent=1 // pred_check_branch
      %76 = sbr.rel (0) target = $region25
    $region24: #{tpu_custom_call.1} parent=1 // pred_region
      _
    $region25: #{tpu_custom_call.1} parent=1 // pred_fallthru
      _
    %77 = vsyncpa [#allocation3], 1

</llo_original>
